<compile_context>
chip_gen: v5e
topology: v5e:2x2
jax: 0.10.0
libtpu: 0.0.40
codegen_flags: <defaults>
</compile_context>

<pallas_src>
import jax
import jax.numpy as jnp
from jax.experimental import pallas as pl
from jax.experimental.pallas import tpu as pltpu


def _make_ln2d_kernel(eps, inv_c):
    eps = float(eps)
    inv_c = float(inv_c)

    def ln2d_kernel(x_ref, w_ref, b_ref, o_ref):
        # x_ref: (TILE_N, C, TILE_HW) -- reduce over C (axis=1, sublanes).
        x = x_ref[...].astype(jnp.float32)
        # Single-pass moments: one reduction sweep, no full-size centered temp.
        s1 = jnp.sum(x, axis=1, keepdims=True)            # (TN, 1, THW)
        s2 = jnp.sum(x * x, axis=1, keepdims=True)        # (TN, 1, THW)
        mu = s1 * inv_c
        var = jnp.maximum(s2 * inv_c - mu * mu, 0.0)      # clamp fp rounding / pad lanes
        y = (x - mu) * jax.lax.rsqrt(var + eps)           # (TN, C, THW)
        # w_ref / b_ref are pre-cast f32 (1, C, 1): broadcast over batch & lanes.
        o_ref[...] = (w_ref[...] * y + b_ref[...]).astype(o_ref.dtype)

    return ln2d_kernel


def _choose_tiles(N, C, HW, itemsize):
    # Lane tile: multiple of 128 (or the full extent when HW is small /
    # not 128-aligned), capped so double-buffered DMA buffers stay well inside
    # the default scoped-VMEM limit on every generation (incl. v7x's 64 MiB).
    if HW % 128 == 0:
        tile_hw = min(HW, 2048)
    elif HW > 128:
        tile_hw = min((HW // 128) * 128, 2048)
    else:
        tile_hw = HW

    # Batch samples per grid step when per-sample tiles are tiny, to amortize
    # the fixed per-grid-step overhead.  Budget per DMA buffer (x4 buffers:
    # 2x in + 2x out, double-buffered) kept conservative.
    per_block_budget = 2 * 1024 * 1024
    bytes_per_sample = max(C * tile_hw * itemsize, 1)
    tile_n = max(1, min(N, per_block_budget // bytes_per_sample))
    return tile_n, tile_hw


def layer_norm_2d(x, weight, bias, eps=1e-6):
    """x: (N, C, H, W); weight, bias: (C,). Returns (N, C, H, W)."""
    N, C, H, W = x.shape
    HW = H * W
    x_flat = x.reshape(N, C, HW)                           # native dtype on the wire
    w3 = weight.astype(jnp.float32).reshape(1, C, 1)       # cast hoisted out of kernel
    b3 = bias.astype(jnp.float32).reshape(1, C, 1)

    tile_n, tile_hw = _choose_tiles(N, C, HW, x.dtype.itemsize)
    grid = (pl.cdiv(N, tile_n), pl.cdiv(HW, tile_hw))

    cost = pl.CostEstimate(
        flops=7 * N * C * HW,
        transcendentals=N * HW,
        bytes_accessed=2 * N * C * HW * x.dtype.itemsize + 2 * C * 4,
    )

    out_flat = pl.pallas_call(
        _make_ln2d_kernel(eps, 1.0 / C),
        out_shape=jax.ShapeDtypeStruct((N, C, HW), x.dtype),
        grid_spec=pltpu.PrefetchScalarGridSpec(
            num_scalar_prefetch=0,
            grid=grid,
            in_specs=[
                pl.BlockSpec((tile_n, C, tile_hw), lambda n, s: (n, 0, s)),  # x
                pl.BlockSpec((1, C, 1), lambda n, s: (0, 0, 0)),             # weight (f32)
                pl.BlockSpec((1, C, 1), lambda n, s: (0, 0, 0)),             # bias   (f32)
            ],
            out_specs=pl.BlockSpec((tile_n, C, tile_hw), lambda n, s: (n, 0, s)),
        ),
        compiler_params=pltpu.CompilerParams(
            dimension_semantics=("parallel", "parallel")),
        cost_estimate=cost,
    )(x_flat, w3, b3)

    return out_flat.reshape(N, C, H, W)


def layer_norm_2d_ref(x, weight, bias, eps=1e-6):
    # Pure-JAX reference matching the PyTorch forward exactly.
    mu = jnp.mean(x, axis=1, keepdims=True)
    var = jnp.mean((x - mu) ** 2, axis=1, keepdims=True)
    y = (x - mu) / jnp.sqrt(var + eps)
    return weight.reshape(1, -1, 1, 1) * y + bias.reshape(1, -1, 1, 1)


if __name__ == "__main__":
    key = jax.random.PRNGKey(0)
    N, C, H, W = 2, 4, 16, 16
    x = jax.random.normal(key, (N, C, H, W), dtype=jnp.float32)

    # Deterministic parameters (nn.Parameter(torch.ones/zeros)), perturbed so
    # the affine part is exercised.
    weight = jnp.ones((C,), dtype=jnp.float32) + 0.1 * jnp.arange(C, dtype=jnp.float32)
    bias = jnp.zeros((C,), dtype=jnp.float32) - 0.05 * jnp.arange(C, dtype=jnp.float32)

    out = layer_norm_2d(x, weight, bias, eps=1e-6)
    out = jax.block_until_ready(out)

    ref = layer_norm_2d_ref(x, weight, bias, eps=1e-6)
    assert out.shape == (N, C, H, W)
    assert jnp.max(jnp.abs(out - ref)) < 1e-5, "mismatch vs reference"

    print("KERNEL_OK")
</pallas_src>

<mosaic_0001>
module attributes {stable_mosaic.version = 11 : i64} {
  func.func @ln2d_kernel(%arg0: i32, %arg1: i32, %arg2: memref<2x4x256xf32, #tpu.memory_space<vmem>>, %arg3: memref<1x4x1xf32, #tpu.memory_space<vmem>>, %arg4: memref<1x4x1xf32, #tpu.memory_space<vmem>>, %arg5: memref<2x4x256xf32, #tpu.memory_space<vmem>>) attributes {dimension_semantics = [#tpu.dimension_semantics<parallel>, #tpu.dimension_semantics<parallel>], iteration_bounds = array<i64: 1, 1>, scalar_prefetch = 0 : i64, scratch_operands = 0 : i64, tpu.core_type = #tpu.core_type<tc>, window_params = [{transform_indices = @transform_0, window_bounds = array<i64: 2, 4, 256>}, {pipeline_mode = #tpu.pipeline_mode<synchronous>, transform_indices = @transform_1, window_bounds = array<i64: 1, 4, 1>}, {pipeline_mode = #tpu.pipeline_mode<synchronous>, transform_indices = @transform_2, window_bounds = array<i64: 1, 4, 1>}, {transform_indices = @transform_3, window_bounds = array<i64: 2, 4, 256>}]} {
    %c0 = arith.constant 0 : index
    %c0_0 = arith.constant 0 : index
    %c0_1 = arith.constant 0 : index
    %0 = vector.load %arg2[%c0, %c0_0, %c0_1] : memref<2x4x256xf32, #tpu.memory_space<vmem>>, vector<2x4x256xf32>
    %cst = arith.constant dense<0.000000e+00> : vector<2x256xf32>
    %1 = vector.multi_reduction <add>, %0, %cst [1] : vector<2x4x256xf32> to vector<2x256xf32>
    %2 = vector.shape_cast %1 : vector<2x256xf32> to vector<2x1x256xf32>
    %3 = arith.mulf %0, %0 : vector<2x4x256xf32>
    %cst_2 = arith.constant dense<0.000000e+00> : vector<2x256xf32>
    %4 = vector.multi_reduction <add>, %3, %cst_2 [1] : vector<2x4x256xf32> to vector<2x256xf32>
    %5 = vector.shape_cast %4 : vector<2x256xf32> to vector<2x1x256xf32>
    %cst_3 = arith.constant 2.500000e-01 : f32
    %6 = vector.broadcast %cst_3 : f32 to vector<2x1x256xf32>
    %7 = arith.mulf %2, %6 : vector<2x1x256xf32>
    %cst_4 = arith.constant 2.500000e-01 : f32
    %8 = vector.broadcast %cst_4 : f32 to vector<2x1x256xf32>
    %9 = arith.mulf %5, %8 : vector<2x1x256xf32>
    %10 = arith.mulf %7, %7 : vector<2x1x256xf32>
    %11 = arith.subf %9, %10 : vector<2x1x256xf32>
    %cst_5 = arith.constant 0.000000e+00 : f32
    %12 = vector.broadcast %cst_5 : f32 to vector<2x1x256xf32>
    %13 = arith.maximumf %11, %12 : vector<2x1x256xf32>
    %14 = vector.broadcast %7 : vector<2x1x256xf32> to vector<2x4x256xf32>
    %15 = arith.subf %0, %14 : vector<2x4x256xf32>
    %cst_6 = arith.constant 9.99999997E-7 : f32
    %16 = vector.broadcast %cst_6 : f32 to vector<2x1x256xf32>
    %17 = arith.addf %13, %16 : vector<2x1x256xf32>
    %18 = math.rsqrt %17 : vector<2x1x256xf32>
    %19 = vector.broadcast %18 : vector<2x1x256xf32> to vector<2x4x256xf32>
    %20 = arith.mulf %15, %19 : vector<2x4x256xf32>
    %c0_7 = arith.constant 0 : index
    %c0_8 = arith.constant 0 : index
    %c0_9 = arith.constant 0 : index
    %21 = vector.load %arg3[%c0_7, %c0_8, %c0_9] : memref<1x4x1xf32, #tpu.memory_space<vmem>>, vector<1x4x1xf32>
    %22 = vector.broadcast %21 : vector<1x4x1xf32> to vector<2x4x256xf32>
    %23 = arith.mulf %22, %20 : vector<2x4x256xf32>
    %c0_10 = arith.constant 0 : index
    %c0_11 = arith.constant 0 : index
    %c0_12 = arith.constant 0 : index
    %24 = vector.load %arg4[%c0_10, %c0_11, %c0_12] : memref<1x4x1xf32, #tpu.memory_space<vmem>>, vector<1x4x1xf32>
    %25 = vector.broadcast %24 : vector<1x4x1xf32> to vector<2x4x256xf32>
    %26 = arith.addf %23, %25 : vector<2x4x256xf32>
    %c0_13 = arith.constant 0 : index
    %c0_14 = arith.constant 0 : index
    %c0_15 = arith.constant 0 : index
    %27 = vector.load %arg5[%c0_13, %c0_14, %c0_15] : memref<2x4x256xf32, #tpu.memory_space<vmem>>, vector<2x4x256xf32>
    tpu.vector_store %arg5[%c0_13, %c0_14, %c0_15], %26 {strides = array<i32>} : memref<2x4x256xf32, #tpu.memory_space<vmem>>, vector<2x4x256xf32>,
    return
  }
  func.func @transform_0(%arg0: i32, %arg1: i32) -> (i32, i32, i32) {
    %c0_i32 = arith.constant 0 : i32
    %c0_i32_0 = arith.constant 0 : i32
    return %arg0, %c0_i32, %arg1 : i32, i32, i32
  }
  func.func @transform_1(%arg0: i32, %arg1: i32) -> (i32, i32, i32) {
    %c0_i32 = arith.constant 0 : i32
    %c0_i32_0 = arith.constant 0 : i32
    %c0_i32_1 = arith.constant 0 : i32
    %c0_i32_2 = arith.constant 0 : i32
    return %c0_i32, %c0_i32_0, %c0_i32_1 : i32, i32, i32
  }
  func.func @transform_2(%arg0: i32, %arg1: i32) -> (i32, i32, i32) {
    %c0_i32 = arith.constant 0 : i32
    %c0_i32_0 = arith.constant 0 : i32
    %c0_i32_1 = arith.constant 0 : i32
    %c0_i32_2 = arith.constant 0 : i32
    return %c0_i32, %c0_i32_0, %c0_i32_1 : i32, i32, i32
  }
  func.func @transform_3(%arg0: i32, %arg1: i32) -> (i32, i32, i32) {
    %c0_i32 = arith.constant 0 : i32
    %c0_i32_0 = arith.constant 0 : i32
    return %arg0, %c0_i32, %arg1 : i32, i32, i32
  }
}

</mosaic_0001>

<llo_original>
// kernel: tpu_custom_call.1
$region0: #{tpu_custom_call.1}
  #allocation0 [shape = 'u32[]', space=smem, size = 0x4, offset = 0x4, fixed_abs, tag = 'smem constant byte address 0x4 - core index']
  #allocation1 [shape = 'u32[72,128]{1,0:T(1,128)}', space=vmem, size = 0x9000, scoped, tag = 'internal scratch']
  %s0 = inlined_call_operand.hbm [shape: f32[2,4,256], index: 0, kind: input, shape index: {}]
  %s1 = inlined_call_operand.vmem [shape: f32[1,4,1], index: 1, kind: input, shape index: {}]
  %s2 = inlined_call_operand.vmem [shape: f32[1,4,1], index: 2, kind: input, shape index: {}]
  %s3 = inlined_call_operand.hbm [shape: f32[2,4,256], index: 3, kind: output, shape index: {}]
  %s4 = sld [smem:[#allocation0]]
  $region26: #{tpu_custom_call.1} parent=0
    _
  %s6 = ssub.s32 1, %s4
  %s7 = scalar_select 0, %s6, %s4
  $region1: #{tpu_custom_call.1} parent=0
    #allocation2 [shape = 'u8[8192]{0}', space=vmem, size = 0x2000, scoped, tag = 'input window, operand 0, single buffered']
    #allocation3 [shape = 's32[1]{0}', space=sflag, size = 0x4, scoped, tag = 'scoped memory for tpu_custom_call.1']
    #allocation4 [shape = 's32[1]{0}', space=sflag, size = 0x4, scoped, tag = 'scoped memory for tpu_custom_call.1']
    #allocation5 [shape = 'u8[8192]{0}', space=vmem, size = 0x2000, scoped, tag = 'output window, operand 0, single buffered']
    %8 = vsyncpa [#allocation3], 0
    %9 = vsyncpa [#allocation4], 0
    // Predicated region
    $region2: #{tpu_custom_call.1} parent=1 // pred_check
      _
    $region3: #{tpu_custom_call.1} parent=1 // pred_check_branch
      %11 = sbr.rel (0) target = $region5
    $region4: #{tpu_custom_call.1} parent=1 // pred_region
      %13 = vsyncadd [#allocation3], 0
      %s14 = sshll.u32 %s0, 4
      %s15 = int_to_ptr.hbm [resolvable:$true] %s14
      %s16 = sshll.u32 [#allocation2], 4
      %s17 = int_to_ptr.vmem [resolvable:$true] %s16
      %22 = dma.hbm_to_vmem [thread:$0]  %s15, 256, %s17, [#allocation3], 128, 128, 8
    $region5: #{tpu_custom_call.1} parent=1 // pred_fallthru
      _
    // Predicated region
    $region6: #{tpu_custom_call.1} parent=1 // pred_check
      _
    $region7: #{tpu_custom_call.1} parent=1 // pred_check_branch
      %24 = sbr.rel (0) target = $region9
    $region8: #{tpu_custom_call.1} parent=1 // pred_region
      _
    $region9: #{tpu_custom_call.1} parent=1 // pred_fallthru
      _
    // Predicated region
    $region10: #{tpu_custom_call.1} parent=1 // pred_check
      _
    $region11: #{tpu_custom_call.1} parent=1 // pred_check_branch
      %26 = sbr.rel (0) target = $region13
    $region12: #{tpu_custom_call.1} parent=1 // pred_region
      _
    $region13: #{tpu_custom_call.1} parent=1 // pred_fallthru
      _
    // Predicated region
    $region14: #{tpu_custom_call.1} parent=1 // pred_check
      _
    $region15: #{tpu_custom_call.1} parent=1 // pred_check_branch
      %28 = sbr.rel (0) target = $region17
    $region16: #{tpu_custom_call.1} parent=1 // pred_region
      %30 = dma.done [#allocation3], 256
    $region17: #{tpu_custom_call.1} parent=1 // pred_fallthru
      _
    %v31 = vld [vmem:[#allocation2] sm:$0xff]
    %v32 = vld [vmem:[#allocation2 + $0x8] sm:$0xff]
    %35 = vst [vmem:[#allocation1] ss:$2 sm:$0xff] %v31
    %v36 = vld.sshfl [vmem:[#allocation1] sm:$0xff pattern:$0x75316420]
    %v37 = vld.sshfl [vmem:[#allocation1 + $0x8] sm:$0xff pattern:$0x75316420]
    %s38 = scalar_lea.vmem [#allocation1], 16
    %39 = vst [vmem:[%s38] ss:$2 sm:$0xff] %v32
    %v40 = vld.sshfl [vmem:[#allocation1 + $0x10] sm:$0xff pattern:$0x75316420]
    %v41 = vld.sshfl [vmem:[#allocation1 + $0x18] sm:$0xff pattern:$0x75316420]
    %vm46 = vcmask 1043456
    %v47 = vsel %vm46, %v36, 0.0
    %v48 = vrot.slane %v47, 4
    %v49 = vadd.f32 %v47, %v48
    %v50 = vrot.slane %v49, 2
    %v51 = vadd.f32 %v49, %v50
    %v52 = vrot.slane %v51, 1
    %v53 = vadd.f32 %v51, %v52
    %v54 = vsel %vm46, %v37, 0.0
    %v55 = vrot.slane %v54, 4
    %v56 = vadd.f32 %v54, %v55
    %v57 = vrot.slane %v56, 2
    %v58 = vadd.f32 %v56, %v57
    %v59 = vrot.slane %v58, 1
    %v60 = vadd.f32 %v58, %v59
    %v61 = vsel %vm46, %v40, 0.0
    %v62 = vrot.slane %v61, 4
    %v63 = vadd.f32 %v61, %v62
    %v64 = vrot.slane %v63, 2
    %v65 = vadd.f32 %v63, %v64
    %v66 = vrot.slane %v65, 1
    %v67 = vadd.f32 %v65, %v66
    %v68 = vsel %vm46, %v41, 0.0
    %v69 = vrot.slane %v68, 4
    %v70 = vadd.f32 %v68, %v69
    %v71 = vrot.slane %v70, 2
    %v72 = vadd.f32 %v70, %v71
    %v73 = vrot.slane %v72, 1
    %v74 = vadd.f32 %v72, %v73
    %v75 = vmul.f32 %v31, %v31
    %v76 = vmul.f32 %v32, %v32
    %79 = vst [vmem:[#allocation1] ss:$2 sm:$0xff] %v75
    %v80 = vld.sshfl [vmem:[#allocation1] sm:$0xff pattern:$0x75316420]
    %v81 = vld.sshfl [vmem:[#allocation1 + $0x8] sm:$0xff pattern:$0x75316420]
    %s82 = scalar_lea.vmem [#allocation1], 16
    %83 = vst [vmem:[%s82] ss:$2 sm:$0xff] %v76
    %v84 = vld.sshfl [vmem:[#allocation1 + $0x10] sm:$0xff pattern:$0x75316420]
    %v85 = vld.sshfl [vmem:[#allocation1 + $0x18] sm:$0xff pattern:$0x75316420]
    %v90 = vsel %vm46, %v80, 0.0
    %v91 = vrot.slane %v90, 4
    %v92 = vadd.f32 %v90, %v91
    %v93 = vrot.slane %v92, 2
    %v94 = vadd.f32 %v92, %v93
    %v95 = vrot.slane %v94, 1
    %v96 = vadd.f32 %v94, %v95
    %v97 = vsel %vm46, %v81, 0.0
    %v98 = vrot.slane %v97, 4
    %v99 = vadd.f32 %v97, %v98
    %v100 = vrot.slane %v99, 2
    %v101 = vadd.f32 %v99, %v100
    %v102 = vrot.slane %v101, 1
    %v103 = vadd.f32 %v101, %v102
    %v104 = vsel %vm46, %v84, 0.0
    %v105 = vrot.slane %v104, 4
    %v106 = vadd.f32 %v104, %v105
    %v107 = vrot.slane %v106, 2
    %v108 = vadd.f32 %v106, %v107
    %v109 = vrot.slane %v108, 1
    %v110 = vadd.f32 %v108, %v109
    %v111 = vsel %vm46, %v85, 0.0
    %v112 = vrot.slane %v111, 4
    %v113 = vadd.f32 %v111, %v112
    %v114 = vrot.slane %v113, 2
    %v115 = vadd.f32 %v113, %v114
    %v116 = vrot.slane %v115, 1
    %v117 = vadd.f32 %v115, %v116
    %v118 = vmul.f32 %v53, 0.25
    %v119 = vmul.f32 %v60, 0.25
    %v120 = vmul.f32 %v67, 0.25
    %v121 = vmul.f32 %v74, 0.25
    %v122 = vmul.f32 %v96, 0.25
    %v123 = vmul.f32 %v103, 0.25
    %v124 = vmul.f32 %v110, 0.25
    %v125 = vmul.f32 %v117, 0.25
    %v126 = vmul.f32 %v118, %v118
    %v127 = vmul.f32 %v119, %v119
    %v128 = vmul.f32 %v120, %v120
    %v129 = vmul.f32 %v121, %v121
    %v130 = vsub.f32 %v122, %v126
    %v131 = vsub.f32 %v123, %v127
    %v132 = vsub.f32 %v124, %v128
    %v133 = vsub.f32 %v125, %v129
    %v134 = vmax.f32 %v130, 0.0
    %v135 = vmax.f32 %v131, 0.0
    %v136 = vmax.f32 %v132, 0.0
    %v137 = vmax.f32 %v133, 0.0
    %v142 = vrot.slane %v119, 4
    %v143 = vrot.slane %v121, 4
    %v144 = vsel %vm46, %v118, %v142
    %v145 = vsel %vm46, %v120, %v143
    %v148 = vsub.f32 %v31, %v144
    %v149 = vsub.f32 %v32, %v145
    %v150 = vadd.f32 %v134, 1e-06
    %v151 = vadd.f32 %v135, 1e-06
    %v152 = vadd.f32 %v136, 1e-06
    %v153 = vadd.f32 %v137, 1e-06
    %v154 = vrsqrt.pop %v150
    %v155 = vmul.f32 %v154, %v150
    %v156 = vmul.f32 %v155, %v154
    %v157 = vmul.f32 0.5, %v156
    %v158 = vsub.f32 1.5, %v157
    %v159 = vmul.f32 %v154, %v158
    %vm160 = vweird.f32 %v150
    %vm161 = vweird.f32 %v154
    %vm162 = vmor %vm160, %vm161
    %v163 = vsel %vm162, %v154, %v159
    %v164 = vrsqrt.pop %v151
    %v165 = vmul.f32 %v164, %v151
    %v166 = vmul.f32 %v165, %v164
    %v167 = vmul.f32 0.5, %v166
    %v168 = vsub.f32 1.5, %v167
    %v169 = vmul.f32 %v164, %v168
    %vm170 = vweird.f32 %v151
    %vm171 = vweird.f32 %v164
    %vm172 = vmor %vm170, %vm171
    %v173 = vsel %vm172, %v164, %v169
    %v174 = vrsqrt.pop %v152
    %v175 = vmul.f32 %v174, %v152
    %v176 = vmul.f32 %v175, %v174
    %v177 = vmul.f32 0.5, %v176
    %v178 = vsub.f32 1.5, %v177
    %v179 = vmul.f32 %v174, %v178
    %vm180 = vweird.f32 %v152
    %vm181 = vweird.f32 %v174
    %vm182 = vmor %vm180, %vm181
    %v183 = vsel %vm182, %v174, %v179
    %v184 = vrsqrt.pop %v153
    %v185 = vmul.f32 %v184, %v153
    %v186 = vmul.f32 %v185, %v184
    %v187 = vmul.f32 0.5, %v186
    %v188 = vsub.f32 1.5, %v187
    %v189 = vmul.f32 %v184, %v188
    %vm190 = vweird.f32 %v153
    %vm191 = vweird.f32 %v184
    %vm192 = vmor %vm190, %vm191
    %v193 = vsel %vm192, %v184, %v189
    %v198 = vrot.slane %v173, 4
    %v199 = vrot.slane %v193, 4
    %v200 = vsel %vm46, %v163, %v198
    %v201 = vsel %vm46, %v183, %v199
    %v204 = vmul.f32 %v148, %v200
    %v205 = vmul.f32 %v149, %v201
    %v206 = vld [vmem:[%s1] sm:$0xf]
    %208 = vset.pattern.permute.xlu0 0
    %209 = vperm.xlu0 %208, %v206
    %v210 = vpop.permute.xlu0 %209
    %214 = vst [vmem:[#allocation1] ss:$2 sm:$0xff] %v204
    %v215 = vld.sshfl [vmem:[#allocation1] sm:$0xff pattern:$0x75316420]
    %v216 = vld.sshfl [vmem:[#allocation1 + $0x8] sm:$0xff pattern:$0x75316420]
    %s217 = scalar_lea.vmem [#allocation1], 16
    %218 = vst [vmem:[%s217] ss:$2 sm:$0xff] %v205
    %v219 = vld.sshfl [vmem:[#allocation1 + $0x10] sm:$0xff pattern:$0x75316420]
    %v220 = vld.sshfl [vmem:[#allocation1 + $0x18] sm:$0xff pattern:$0x75316420]
    %v225 = vmul.f32 %v210, %v215
    %v226 = vmul.f32 %v210, %v216
    %v227 = vmul.f32 %v210, %v219
    %v228 = vmul.f32 %v210, %v220
    %v229 = vld [vmem:[%s2] sm:$0xf]
    %231 = vset.pattern.permute.xlu0 0
    %232 = vperm.xlu0 %231, %v229
    %v233 = vpop.permute.xlu0 %232
    %v235 = vadd.f32 %v225, %v233
    %v236 = vadd.f32 %v226, %v233
    %v237 = vadd.f32 %v227, %v233
    %v238 = vadd.f32 %v228, %v233
    %v243 = vrot.slane %v236, 4
    %v244 = vrot.slane %v238, 4
    %v245 = vsel %vm46, %v235, %v243
    %v246 = vsel %vm46, %v237, %v244
    %249 = vst [vmem:[#allocation5] sm:$0xff] %v245
    %250 = vst [vmem:[#allocation5 + $0x8] sm:$0xff] %v246
    // Predicated region
    $region18: #{tpu_custom_call.1} parent=1 // pred_check
      _
    $region19: #{tpu_custom_call.1} parent=1 // pred_check_branch
      %252 = sbr.rel (0) target = $region21
    $region20: #{tpu_custom_call.1} parent=1 // pred_region
      %254 = vsyncadd [#allocation4], 0
      %s255 = sshll.u32 [#allocation5], 4
      %s256 = int_to_ptr.vmem [resolvable:$true] %s255
      %s257 = sshll.u32 %s3, 4
      %s258 = int_to_ptr.hbm [resolvable:$true] %s257
      %263 = dma.vmem_to_hbm [thread:$0]  %s256, 256, %s258, [#allocation4], 128, 128, 8
    $region21: #{tpu_custom_call.1} parent=1 // pred_fallthru
      _
    // Predicated region
    $region22: #{tpu_custom_call.1} parent=1 // pred_check
      _
    $region23: #{tpu_custom_call.1} parent=1 // pred_check_branch
      %265 = sbr.rel (0) target = $region25
    $region24: #{tpu_custom_call.1} parent=1 // pred_region
      %267 = dma.done [#allocation4], 256
    $region25: #{tpu_custom_call.1} parent=1 // pred_fallthru
      _
    %268 = vsyncpa [#allocation3], 1
    %269 = vsyncpa [#allocation4], 1

</llo_original>
